<compile_context>
chip_gen: v7x
topology: tpu7x:2x2x1
jax: 0.10.0
libtpu: 0.0.40
codegen_flags: <defaults>
</compile_context>

<pallas_src>
import functools

import jax
import jax.numpy as jnp
from jax.experimental import pallas as pl
from jax.experimental.pallas import tpu as pltpu


def _round_up(x, m):
    return ((x + m - 1) // m) * m


def gate_kernel(x1_ref, x2_ref, x3_ref, w_ref, c_ref, out_ref):
    # x*_ref : (TILE_B, 256)  streamed from HBM each grid step
    # w_ref  : (768, 3)       block-diagonal folded weights, VMEM-resident (constant index_map)
    # c_ref  : (1, 1)         folded bias, VMEM-resident
    # out_ref: (TILE_B, 3)
    #
    # One MXU matvec per branch; branch g's score lands in column g of z.
    z = jnp.dot(x1_ref[...], w_ref[0:256, :], preferred_element_type=jnp.float32)
    z = z + jnp.dot(x2_ref[...], w_ref[256:512, :], preferred_element_type=jnp.float32)
    z = z + jnp.dot(x3_ref[...], w_ref[512:768, :], preferred_element_type=jnp.float32)
    z = z + c_ref[...]                                  # (TILE_B, 3), f32

    # sigmoid (one EUP sweep over the compact (TILE_B, 3) array)
    s = 1.0 / (1.0 + jnp.exp(-z))

    # softmax over the 3 gates; s in (0,1) so no max-subtraction is needed.
    e = jnp.exp(s)
    denom = jnp.sum(e, axis=-1, keepdims=True)          # 3-lane reduce, tiny
    out_ref[...] = (e / denom).astype(out_ref.dtype)


@functools.partial(jax.jit, static_argnames=("tile_b",))
def gate_forward(x1, x2, x3, params, *, tile_b=4096):
    """x1, x2, x3: (B, 256). Returns (B, 3) softmax gate weights (float32)."""
    w1, b1, w2, b2, w3, b3 = params  # weights stored (in, out), biases (1, out)

    # --- trace-time algebraic folding (exact) ---
    ones32 = jnp.full((32, 1), 1.0 / 32.0, jnp.float32)
    v_eff = (w1 @ (w2 @ (w3 @ ones32))).reshape(256)                  # (256,)
    c_eff = jnp.mean((b1 @ w2 + b2) @ w3 + b3).reshape(1, 1)          # (1, 1)

    # Block-diagonal (768, 3): column g holds v_eff for branch g, so each branch's
    # (tile,256)@(256,3) dot writes its score straight into its own output column.
    w_blk = jnp.zeros((768, 3), jnp.float32)
    w_blk = w_blk.at[0:256, 0].set(v_eff)
    w_blk = w_blk.at[256:512, 1].set(v_eff)
    w_blk = w_blk.at[512:768, 2].set(v_eff)
    w_blk = w_blk.astype(x1.dtype)                                    # match streamed dtype

    B = x1.shape[0]
    # Tile: multiple of 8 (sublane), capped at tile_b. 4096 -> 24 MiB double-buffered
    # inputs + ~4 MiB output buffers, within the 48 MiB scoped VMEM requested below.
    tile = min(tile_b, _round_up(B, 8))
    grid = (pl.cdiv(B, tile),)   # last block may be partial; all ops are row-local.

    x_spec = pl.BlockSpec((tile, 256), lambda i: (i, 0))
    w_spec = pl.BlockSpec((768, 3), lambda i: (0, 0))     # resident across grid
    c_spec = pl.BlockSpec((1, 1), lambda i: (0, 0))       # resident across grid
    out_spec = pl.BlockSpec((tile, 3), lambda i: (i, 0))

    return pl.pallas_call(
        gate_kernel,
        out_shape=jax.ShapeDtypeStruct((B, 3), jnp.float32),
        grid=grid,
        in_specs=[x_spec, x_spec, x_spec, w_spec, c_spec],
        out_specs=out_spec,
        compiler_params=pltpu.CompilerParams(
            # TODO(synk): on v7x verify "parallel" shards the batch grid across both
            # TensorCores; if not, switch this axis to pltpu.CORE_PARALLEL.
            dimension_semantics=("parallel",),
            vmem_limit_bytes=48 << 20,
        ),
    )(x1, x2, x3, w_blk, c_eff)


def init_params(key):
    """Deterministic init matching nn.Linear shapes (weights stored as (in, out))."""
    ks = jax.random.split(key, 6)

    def linear(kw, kb, fan_in, fan_out):
        bound = 1.0 / jnp.sqrt(jnp.float32(fan_in))
        w = jax.random.uniform(kw, (fan_in, fan_out), jnp.float32, -bound, bound)
        b = jax.random.uniform(kb, (1, fan_out), jnp.float32, -bound, bound)
        return w, b

    w1, b1 = linear(ks[0], ks[1], 256, 128)
    w2, b2 = linear(ks[2], ks[3], 128, 64)
    w3, b3 = linear(ks[4], ks[5], 64, 32)
    return (w1, b1, w2, b2, w3, b3)


def gate_reference(x1, x2, x3, params):
    """Pure-JAX reference of the PyTorch forward (unfolded 3-layer chain)."""
    w1, b1, w2, b2, w3, b3 = params

    def branch(x):
        h = x @ w1 + b1
        h = h @ w2 + b2
        h = h @ w3 + b3
        s = jnp.mean(h, axis=-1, keepdims=True)   # AdaptiveAvgPool1d(1) over 32 feats
        return jax.nn.sigmoid(s)

    sc = jnp.concatenate([branch(x1), branch(x2), branch(x3)], axis=1)
    return jax.nn.softmax(sc, axis=1)


if __name__ == "__main__":
    key = jax.random.PRNGKey(0)
    kp, k1, k2, k3 = jax.random.split(key, 4)

    B = 37  # deliberately not a multiple of 8: exercises the partial-block path
    params = init_params(kp)
    x1 = jax.random.normal(k1, (B, 256), jnp.float32)
    x2 = jax.random.normal(k2, (B, 256), jnp.float32)
    x3 = jax.random.normal(k3, (B, 256), jnp.float32)

    ref = gate_reference(x1, x2, x3, params)

    # Default tiling (single, partial block).
    out = jax.block_until_ready(gate_forward(x1, x2, x3, params))
    assert out.shape == (B, 3)
    assert jnp.allclose(out, ref, atol=1e-5, rtol=1e-5)
    assert jnp.allclose(jnp.sum(out, axis=1), 1.0, atol=1e-5)

    # Small tiles: multi-step grid with a partial final block.
    out_t = jax.block_until_ready(gate_forward(x1, x2, x3, params, tile_b=16))
    assert out_t.shape == (B, 3)
    assert jnp.allclose(out_t, ref, atol=1e-5, rtol=1e-5)
    assert jnp.allclose(jnp.sum(out_t, axis=1), 1.0, atol=1e-5)

    print("KERNEL_OK")
</pallas_src>

<mosaic_0001>
module attributes {stable_mosaic.version = 11 : i64} {
  func.func @gate_kernel(%arg0: i32, %arg1: memref<40x256xf32, #tpu.memory_space<vmem>>, %arg2: memref<40x256xf32, #tpu.memory_space<vmem>>, %arg3: memref<40x256xf32, #tpu.memory_space<vmem>>, %arg4: memref<768x3xf32, #tpu.memory_space<vmem>>, %arg5: memref<1x1xf32, #tpu.memory_space<vmem>>, %arg6: memref<40x3xf32, #tpu.memory_space<vmem>>) attributes {dimension_semantics = [#tpu.dimension_semantics<parallel>], iteration_bounds = array<i64: 1>, scalar_prefetch = 0 : i64, scratch_operands = 0 : i64, tpu.core_type = #tpu.core_type<tc>, window_params = [{transform_indices = @transform_0, window_bounds = array<i64: 40, 256>}, {transform_indices = @transform_1, window_bounds = array<i64: 40, 256>}, {transform_indices = @transform_2, window_bounds = array<i64: 40, 256>}, {pipeline_mode = #tpu.pipeline_mode<synchronous>, transform_indices = @transform_3, window_bounds = array<i64: 768, 3>}, {pipeline_mode = #tpu.pipeline_mode<synchronous>, transform_indices = @transform_4, window_bounds = array<i64: 1, 1>}, {transform_indices = @transform_5, window_bounds = array<i64: 40, 3>}]} {
    %c0 = arith.constant 0 : index
    %c0_0 = arith.constant 0 : index
    %0 = vector.load %arg1[%c0, %c0_0] : memref<40x256xf32, #tpu.memory_space<vmem>>, vector<40x256xf32>
    %c0_1 = arith.constant 0 : index
    %c0_2 = arith.constant 0 : index
    %1 = vector.load %arg4[%c0_1, %c0_2] : memref<768x3xf32, #tpu.memory_space<vmem>>, vector<256x3xf32>
    %cst = arith.constant dense<0.000000e+00> : vector<40x3xf32>
    %2 = tpu.matmul %0, %1, %cst {dimension_numbers = #tpu.dot_dimension_numbers<[1], [0], [0], [1], [0, 0, 1, 1], [], []>} : vector<40x256xf32>, vector<256x3xf32>, vector<40x3xf32> -> vector<40x3xf32>
    %c0_3 = arith.constant 0 : index
    %c0_4 = arith.constant 0 : index
    %3 = vector.load %arg2[%c0_3, %c0_4] : memref<40x256xf32, #tpu.memory_space<vmem>>, vector<40x256xf32>
    %c256 = arith.constant 256 : index
    %c0_5 = arith.constant 0 : index
    %4 = vector.load %arg4[%c256, %c0_5] : memref<768x3xf32, #tpu.memory_space<vmem>>, vector<256x3xf32>
    %cst_6 = arith.constant dense<0.000000e+00> : vector<40x3xf32>
    %5 = tpu.matmul %3, %4, %cst_6 {dimension_numbers = #tpu.dot_dimension_numbers<[1], [0], [0], [1], [0, 0, 1, 1], [], []>} : vector<40x256xf32>, vector<256x3xf32>, vector<40x3xf32> -> vector<40x3xf32>
    %6 = arith.addf %2, %5 : vector<40x3xf32>
    %c0_7 = arith.constant 0 : index
    %c0_8 = arith.constant 0 : index
    %7 = vector.load %arg3[%c0_7, %c0_8] : memref<40x256xf32, #tpu.memory_space<vmem>>, vector<40x256xf32>
    %c512 = arith.constant 512 : index
    %c0_9 = arith.constant 0 : index
    %8 = vector.load %arg4[%c512, %c0_9] : memref<768x3xf32, #tpu.memory_space<vmem>>, vector<256x3xf32>
    %cst_10 = arith.constant dense<0.000000e+00> : vector<40x3xf32>
    %9 = tpu.matmul %7, %8, %cst_10 {dimension_numbers = #tpu.dot_dimension_numbers<[1], [0], [0], [1], [0, 0, 1, 1], [], []>} : vector<40x256xf32>, vector<256x3xf32>, vector<40x3xf32> -> vector<40x3xf32>
    %10 = arith.addf %6, %9 : vector<40x3xf32>
    %c0_11 = arith.constant 0 : index
    %c0_12 = arith.constant 0 : index
    %11 = vector.load %arg5[%c0_11, %c0_12] : memref<1x1xf32, #tpu.memory_space<vmem>>, vector<1x1xf32>
    %12 = vector.broadcast %11 : vector<1x1xf32> to vector<40x3xf32>
    %13 = arith.addf %10, %12 : vector<40x3xf32>
    %cst_13 = arith.constant 0.000000e+00 : f32
    %14 = vector.broadcast %cst_13 : f32 to vector<40x3xf32>
    %15 = arith.subf %14, %13 : vector<40x3xf32>
    %16 = math.exp %15 : vector<40x3xf32>
    %cst_14 = arith.constant 1.000000e+00 : f32
    %17 = vector.broadcast %cst_14 : f32 to vector<40x3xf32>
    %18 = arith.addf %17, %16 : vector<40x3xf32>
    %cst_15 = arith.constant 1.000000e+00 : f32
    %19 = vector.broadcast %cst_15 : f32 to vector<40x3xf32>
    %20 = arith.divf %19, %18 : vector<40x3xf32>
    %21 = math.exp %20 : vector<40x3xf32>
    %cst_16 = arith.constant dense<0.000000e+00> : vector<40xf32>
    %22 = vector.multi_reduction <add>, %21, %cst_16 [1] : vector<40x3xf32> to vector<40xf32>
    %23 = vector.shape_cast %22 : vector<40xf32> to vector<40x1xf32>
    %24 = vector.broadcast %23 : vector<40x1xf32> to vector<40x3xf32>
    %25 = arith.divf %21, %24 : vector<40x3xf32>
    %c0_17 = arith.constant 0 : index
    %c0_18 = arith.constant 0 : index
    %26 = vector.load %arg6[%c0_17, %c0_18] : memref<40x3xf32, #tpu.memory_space<vmem>>, vector<40x3xf32>
    tpu.vector_store %arg6[%c0_17, %c0_18], %25 {strides = array<i32>} : memref<40x3xf32, #tpu.memory_space<vmem>>, vector<40x3xf32>,
    return
  }
  func.func @transform_0(%arg0: i32) -> (i32, i32) {
    %c0_i32 = arith.constant 0 : i32
    %c0_i32_0 = arith.constant 0 : i32
    return %arg0, %c0_i32 : i32, i32
  }
  func.func @transform_1(%arg0: i32) -> (i32, i32) {
    %c0_i32 = arith.constant 0 : i32
    %c0_i32_0 = arith.constant 0 : i32
    return %arg0, %c0_i32 : i32, i32
  }
  func.func @transform_2(%arg0: i32) -> (i32, i32) {
    %c0_i32 = arith.constant 0 : i32
    %c0_i32_0 = arith.constant 0 : i32
    return %arg0, %c0_i32 : i32, i32
  }
  func.func @transform_3(%arg0: i32) -> (i32, i32) {
    %c0_i32 = arith.constant 0 : i32
    %c0_i32_0 = arith.constant 0 : i32
    %c0_i32_1 = arith.constant 0 : i32
    return %c0_i32, %c0_i32_0 : i32, i32
  }
  func.func @transform_4(%arg0: i32) -> (i32, i32) {
    %c0_i32 = arith.constant 0 : i32
    %c0_i32_0 = arith.constant 0 : i32
    %c0_i32_1 = arith.constant 0 : i32
    return %c0_i32, %c0_i32_0 : i32, i32
  }
  func.func @transform_5(%arg0: i32) -> (i32, i32) {
    %c0_i32 = arith.constant 0 : i32
    %c0_i32_0 = arith.constant 0 : i32
    return %arg0, %c0_i32 : i32, i32
  }
}

</mosaic_0001>

<llo_original>
// kernel: gate_forward.1
$region0: #{gate_forward.1}
  #allocation0 [shape = 'u32[]', space=smem, size = 0x4, offset = 0x4, fixed_abs, tag = 'smem constant byte address 0x4 - core index']
  #allocation1 [shape = 'u32[144,128]{1,0:T(1,128)}', space=vmem, size = 0x12000, scoped, tag = 'internal scratch']
  #allocation2 [shape = 'f32[1,1]{1,0:T(1,128)S(1)}', space=vmem, size = 0x200, scoped, tag = 'scoped memory for gate_forward.1']
  %s0 = inlined_call_operand.vmem [shape: f32[37,256], index: 0, kind: input, shape index: {}]
  %s1 = inlined_call_operand.vmem [shape: f32[37,256], index: 1, kind: input, shape index: {}]
  %s2 = inlined_call_operand.vmem [shape: f32[37,256], index: 2, kind: input, shape index: {}]
  %s3 = inlined_call_operand.vmem [shape: f32[768,3], index: 3, kind: input, shape index: {}]
  %s4 = inlined_call_operand.<no memory space> [shape: f32[1,1], index: 4, kind: input, shape index: {}]
  %s5 = inlined_call_operand.vmem [shape: f32[37,3], index: 5, kind: output, shape index: {}]
  %s6 = sld [smem:[#allocation0]]
  $region30: #{gate_forward.1} parent=0
    _
  %s8 = ssub.s32 1, %s6
  %s9 = scalar_select 0, %s8, %s6
  %v10 = vstv %s4
  %11 = vst [vmem:[#allocation2] sm:$0x1] %v10
  // Predicated region
  $region2: #{gate_forward.1} parent=0 // pred_check
    _
  $region3: #{gate_forward.1} parent=0 // pred_check_branch
    %13 = sbr.rel (0) target = $region5
  $region4: #{gate_forward.1} parent=0 // pred_region
    _
  $region5: #{gate_forward.1} parent=0 // pred_fallthru
    _
  // Predicated region
  $region6: #{gate_forward.1} parent=0 // pred_check
    _
  $region7: #{gate_forward.1} parent=0 // pred_check_branch
    %15 = sbr.rel (0) target = $region9
  $region8: #{gate_forward.1} parent=0 // pred_region
    _
  $region9: #{gate_forward.1} parent=0 // pred_fallthru
    _
  // Predicated region
  $region10: #{gate_forward.1} parent=0 // pred_check
    _
  $region11: #{gate_forward.1} parent=0 // pred_check_branch
    %17 = sbr.rel (0) target = $region13
  $region12: #{gate_forward.1} parent=0 // pred_region
    _
  $region13: #{gate_forward.1} parent=0 // pred_fallthru
    _
  // Predicated region
  $region14: #{gate_forward.1} parent=0 // pred_check
    _
  $region15: #{gate_forward.1} parent=0 // pred_check_branch
    %19 = sbr.rel (0) target = $region17
  $region16: #{gate_forward.1} parent=0 // pred_region
    _
  $region17: #{gate_forward.1} parent=0 // pred_fallthru
    _
  // Predicated region
  $region18: #{gate_forward.1} parent=0 // pred_check
    _
  $region19: #{gate_forward.1} parent=0 // pred_check_branch
    %21 = sbr.rel (0) target = $region21
  $region20: #{gate_forward.1} parent=0 // pred_region
    _
  $region21: #{gate_forward.1} parent=0 // pred_fallthru
    _
  %v22 = vld [vmem:[%s0] sm:$0xff]
  %v23 = vld [vmem:[%s0 + $0x8] sm:$0xff]
  %v24 = vld [vmem:[%s0 + $0x10] sm:$0xff]
  %v25 = vld [vmem:[%s0 + $0x18] sm:$0xff]
  %v26 = vld [vmem:[%s0 + $0x20] sm:$0xff]
  %v27 = vld [vmem:[%s0 + $0x28] sm:$0xff]
  %v28 = vld [vmem:[%s0 + $0x30] sm:$0xff]
  %v29 = vld [vmem:[%s0 + $0x38] sm:$0xff]
  %v30 = vld [vmem:[%s0 + $0x40] sm:$0xff]
  %v31 = vld [vmem:[%s0 + $0x48] sm:$0xff]
  %v32 = vld [vmem:[%s3] sm:$0xff]
  %v33 = vld [vmem:[%s3 + $0x8] sm:$0xff]
  %v34 = vld [vmem:[%s3 + $0x10] sm:$0xff]
  %v35 = vld [vmem:[%s3 + $0x18] sm:$0xff]
  %v36 = vld [vmem:[%s3 + $0x20] sm:$0xff]
  %v37 = vld [vmem:[%s3 + $0x28] sm:$0xff]
  %v38 = vld [vmem:[%s3 + $0x30] sm:$0xff]
  %v39 = vld [vmem:[%s3 + $0x38] sm:$0xff]
  %v40 = vld [vmem:[%s3 + $0x40] sm:$0xff]
  %v41 = vld [vmem:[%s3 + $0x48] sm:$0xff]
  %v42 = vld [vmem:[%s3 + $0x50] sm:$0xff]
  %v43 = vld [vmem:[%s3 + $0x58] sm:$0xff]
  %v44 = vld [vmem:[%s3 + $0x60] sm:$0xff]
  %v45 = vld [vmem:[%s3 + $0x68] sm:$0xff]
  %v46 = vld [vmem:[%s3 + $0x70] sm:$0xff]
  %v47 = vld [vmem:[%s3 + $0x78] sm:$0xff]
  %v48 = vld [vmem:[%s3 + $0x80] sm:$0xff]
  %v49 = vld [vmem:[%s3 + $0x88] sm:$0xff]
  %v50 = vld [vmem:[%s3 + $0x90] sm:$0xff]
  %v51 = vld [vmem:[%s3 + $0x98] sm:$0xff]
  %v52 = vld [vmem:[%s3 + $0xa0] sm:$0xff]
  %v53 = vld [vmem:[%s3 + $0xa8] sm:$0xff]
  %v54 = vld [vmem:[%s3 + $0xb0] sm:$0xff]
  %v55 = vld [vmem:[%s3 + $0xb8] sm:$0xff]
  %v56 = vld [vmem:[%s3 + $0xc0] sm:$0xff]
  %v57 = vld [vmem:[%s3 + $0xc8] sm:$0xff]
  %v58 = vld [vmem:[%s3 + $0xd0] sm:$0xff]
  %v59 = vld [vmem:[%s3 + $0xd8] sm:$0xff]
  %v60 = vld [vmem:[%s3 + $0xe0] sm:$0xff]
  %v61 = vld [vmem:[%s3 + $0xe8] sm:$0xff]
  %v62 = vld [vmem:[%s3 + $0xf0] sm:$0xff]
  %v63 = vld [vmem:[%s3 + $0xf8] sm:$0xff]
  %v64 = vld [vmem:[%s1] sm:$0xff]
  %v65 = vld [vmem:[%s1 + $0x8] sm:$0xff]
  %v66 = vld [vmem:[%s1 + $0x10] sm:$0xff]
  %v67 = vld [vmem:[%s1 + $0x18] sm:$0xff]
  %v68 = vld [vmem:[%s1 + $0x20] sm:$0xff]
  %v69 = vld [vmem:[%s1 + $0x28] sm:$0xff]
  %v70 = vld [vmem:[%s1 + $0x30] sm:$0xff]
  %v71 = vld [vmem:[%s1 + $0x38] sm:$0xff]
  %v72 = vld [vmem:[%s1 + $0x40] sm:$0xff]
  %v73 = vld [vmem:[%s1 + $0x48] sm:$0xff]
  %v74 = vld [vmem:[%s3 + $0x100] sm:$0xff]
  %v75 = vld [vmem:[%s3 + $0x108] sm:$0xff]
  %v76 = vld [vmem:[%s3 + $0x110] sm:$0xff]
  %v77 = vld [vmem:[%s3 + $0x118] sm:$0xff]
  %v78 = vld [vmem:[%s3 + $0x120] sm:$0xff]
  %v79 = vld [vmem:[%s3 + $0x128] sm:$0xff]
  %v80 = vld [vmem:[%s3 + $0x130] sm:$0xff]
  %v81 = vld [vmem:[%s3 + $0x138] sm:$0xff]
  %v82 = vld [vmem:[%s3 + $0x140] sm:$0xff]
  %v83 = vld [vmem:[%s3 + $0x148] sm:$0xff]
  %v84 = vld [vmem:[%s3 + $0x150] sm:$0xff]
  %v85 = vld [vmem:[%s3 + $0x158] sm:$0xff]
  %v86 = vld [vmem:[%s3 + $0x160] sm:$0xff]
  %v87 = vld [vmem:[%s3 + $0x168] sm:$0xff]
  %v88 = vld [vmem:[%s3 + $0x170] sm:$0xff]
  %v89 = vld [vmem:[%s3 + $0x178] sm:$0xff]
  %v90 = vld [vmem:[%s3 + $0x180] sm:$0xff]
  %v91 = vld [vmem:[%s3 + $0x188] sm:$0xff]
  %v92 = vld [vmem:[%s3 + $0x190] sm:$0xff]
  %v93 = vld [vmem:[%s3 + $0x198] sm:$0xff]
  %v94 = vld [vmem:[%s3 + $0x1a0] sm:$0xff]
  %v95 = vld [vmem:[%s3 + $0x1a8] sm:$0xff]
  %v96 = vld [vmem:[%s3 + $0x1b0] sm:$0xff]
  %v97 = vld [vmem:[%s3 + $0x1b8] sm:$0xff]
  %v98 = vld [vmem:[%s3 + $0x1c0] sm:$0xff]
  %v99 = vld [vmem:[%s3 + $0x1c8] sm:$0xff]
  %v100 = vld [vmem:[%s3 + $0x1d0] sm:$0xff]
  %v101 = vld [vmem:[%s3 + $0x1d8] sm:$0xff]
  %v102 = vld [vmem:[%s3 + $0x1e0] sm:$0xff]
  %v103 = vld [vmem:[%s3 + $0x1e8] sm:$0xff]
  %v104 = vld [vmem:[%s3 + $0x1f0] sm:$0xff]
  %v105 = vld [vmem:[%s3 + $0x1f8] sm:$0xff]
  %106 = vmatprep.subr.mxu0 0.0
  %107 = vmatpush1.msra.mxu0 %v74
  %108 = vmatprep.subr.mxu0 0.0
  %109 = vmatpush1.msra.mxu0 %v75
  %110 = vmatprep.subr.mxu0 0.0
  %111 = vmatpush1.msra.mxu0 %v76
  %112 = vmatprep.subr.mxu0 0.0
  %113 = vmatpush1.msra.mxu0 %v77
  %114 = vmatprep.subr.mxu0 0.0
  %115 = vmatpush1.msra.mxu0 %v78
  %116 = vmatprep.subr.mxu0 0.0
  %117 = vmatpush1.msra.mxu0 %v79
  %118 = vmatprep.subr.mxu0 0.0
  %119 = vmatpush1.msra.mxu0 %v80
  %120 = vmatprep.subr.mxu0 0.0
  %121 = vmatpush1.msra.mxu0 %v81
  %122 = vmatprep.subr.mxu0 0.0
  %123 = vmatpush1.msra.mxu0 %v82
  %124 = vmatprep.subr.mxu0 0.0
  %125 = vmatpush1.msra.mxu0 %v83
  %126 = vmatprep.subr.mxu0 0.0
  %127 = vmatpush1.msra.mxu0 %v84
  %128 = vmatprep.subr.mxu0 0.0
  %129 = vmatpush1.msra.mxu0 %v85
  %130 = vmatprep.subr.mxu0 0.0
  %131 = vmatpush1.msra.mxu0 %v86
  %132 = vmatprep.subr.mxu0 0.0
  %133 = vmatpush1.msra.mxu0 %v87
  %134 = vmatprep.subr.mxu0 0.0
  %135 = vmatpush1.msra.mxu0 %v88
  %136 = vmatprep.subr.mxu0 0.0
  %137 = vmatpush1.msra.mxu0 %v89
  %138 = vmatprep.subr.mxu0 0.0
  %139 = vmatpush1.msra.mxu0 %v90
  %140 = vmatprep.subr.mxu0 0.0
  %141 = vmatpush1.msra.mxu0 %v91
  %142 = vmatprep.subr.mxu0 0.0
  %143 = vmatpush1.msra.mxu0 %v92
  %144 = vmatprep.subr.mxu0 0.0
  %145 = vmatpush1.msra.mxu0 %v93
  %146 = vmatprep.subr.mxu0 0.0
  %147 = vmatpush1.msra.mxu0 %v94
  %148 = vmatprep.subr.mxu0 0.0
  %149 = vmatpush1.msra.mxu0 %v95
  %150 = vmatprep.subr.mxu0 0.0
  %151 = vmatpush1.msra.mxu0 %v96
  %152 = vmatprep.subr.mxu0 0.0
  %153 = vmatpush1.msra.mxu0 %v97
  %154 = vmatprep.subr.mxu0 0.0
  %155 = vmatpush1.msra.mxu0 %v98
  %156 = vmatprep.subr.mxu0 0.0
  %157 = vmatpush1.msra.mxu0 %v99
  %158 = vmatprep.subr.mxu0 0.0
  %159 = vmatpush1.msra.mxu0 %v100
  %160 = vmatprep.subr.mxu0 0.0
  %161 = vmatpush1.msra.mxu0 %v101
  %162 = vmatprep.subr.mxu0 0.0
  %163 = vmatpush1.msra.mxu0 %v102
  %164 = vmatprep.subr.mxu0 0.0
  %165 = vmatpush1.msra.mxu0 %v103
  %166 = vmatprep.subr.mxu0 0.0
  %167 = vmatpush1.msra.mxu0 %v104
  %168 = vmatprep.subr.mxu0 0.0
  %169 = vmatpush1.msra.mxu0 %v105
  %170 = vmatprep.mubr.f32.mxu0 %v65
  %171 = vmatmul.mubr.f32.gmra.mrb[0].mxu0 %v64
  %v172 = vpop.f32.mrb[0].mxu0
  %v173 = vadd.f32 0.0, %v172
  %v174 = vpop.f32.mrb[0].mxu0
  %175 = vmatprep.mubr.f32.mxu0 %v67
  %176 = vmatmul.mubr.f32.gmra.mrb[0].mxu0 %v66
  %v177 = vpop.f32.mrb[0].mxu0
  %v178 = vadd.f32 0.0, %v177
  %v179 = vpop.f32.mrb[0].mxu0
  %180 = vmatprep.mubr.f32.mxu0 %v69
  %181 = vmatmul.mubr.f32.gmra.mrb[0].mxu0 %v68
  %v182 = vpop.f32.mrb[0].mxu0
  %v183 = vadd.f32 0.0, %v182
  %v184 = vpop.f32.mrb[0].mxu0
  %185 = vmatprep.mubr.f32.mxu0 %v71
  %186 = vmatmul.mubr.f32.gmra.mrb[0].mxu0 %v70
  %v187 = vpop.f32.mrb[0].mxu0
  %v188 = vadd.f32 0.0, %v187
  %v189 = vpop.f32.mrb[0].mxu0
  %190 = vmatprep.mubr.f32.mxu0 %v73
  %191 = vmatmul.mubr.f32.gmra.mrb[0].mxu0 %v72
  %v192 = vpop.f32.mrb[0].mxu0
  %v193 = vadd.f32 0.0, %v192
  %v194 = vpop.f32.mrb[0].mxu0
  %195 = vdwg.mxu0
  %196 = vmatprep.subr.mxu0 0.0
  %197 = vmatpush1.msra.mxu0 %v32
  %198 = vmatprep.subr.mxu0 0.0
  %199 = vmatpush1.msra.mxu0 %v33
  %200 = vmatprep.subr.mxu0 0.0
  %201 = vmatpush1.msra.mxu0 %v34
  %202 = vmatprep.subr.mxu0 0.0
  %203 = vmatpush1.msra.mxu0 %v35
  %204 = vmatprep.subr.mxu0 0.0
  %205 = vmatpush1.msra.mxu0 %v36
  %206 = vmatprep.subr.mxu0 0.0
  %207 = vmatpush1.msra.mxu0 %v37
  %208 = vmatprep.subr.mxu0 0.0
  %209 = vmatpush1.msra.mxu0 %v38
  %210 = vmatprep.subr.mxu0 0.0
  %211 = vmatpush1.msra.mxu0 %v39
  %212 = vmatprep.subr.mxu0 0.0
  %213 = vmatpush1.msra.mxu0 %v40
  %214 = vmatprep.subr.mxu0 0.0
  %215 = vmatpush1.msra.mxu0 %v41
  %216 = vmatprep.subr.mxu0 0.0
  %217 = vmatpush1.msra.mxu0 %v42
  %218 = vmatprep.subr.mxu0 0.0
  %219 = vmatpush1.msra.mxu0 %v43
  %220 = vmatprep.subr.mxu0 0.0
  %221 = vmatpush1.msra.mxu0 %v44
  %222 = vmatprep.subr.mxu0 0.0
  %223 = vmatpush1.msra.mxu0 %v45
  %224 = vmatprep.subr.mxu0 0.0
  %225 = vmatpush1.msra.mxu0 %v46
  %226 = vmatprep.subr.mxu0 0.0
  %227 = vmatpush1.msra.mxu0 %v47
  %228 = vmatprep.subr.mxu0 0.0
  %229 = vmatpush1.msra.mxu0 %v48
  %230 = vmatprep.subr.mxu0 0.0
  %231 = vmatpush1.msra.mxu0 %v49
  %232 = vmatprep.subr.mxu0 0.0
  %233 = vmatpush1.msra.mxu0 %v50
  %234 = vmatprep.subr.mxu0 0.0
  %235 = vmatpush1.msra.mxu0 %v51
  %236 = vmatprep.subr.mxu0 0.0
  %237 = vmatpush1.msra.mxu0 %v52
  %238 = vmatprep.subr.mxu0 0.0
  %239 = vmatpush1.msra.mxu0 %v53
  %240 = vmatprep.subr.mxu0 0.0
  %241 = vmatpush1.msra.mxu0 %v54
  %242 = vmatprep.subr.mxu0 0.0
  %243 = vmatpush1.msra.mxu0 %v55
  %244 = vmatprep.subr.mxu0 0.0
  %245 = vmatpush1.msra.mxu0 %v56
  %246 = vmatprep.subr.mxu0 0.0
  %247 = vmatpush1.msra.mxu0 %v57
  %248 = vmatprep.subr.mxu0 0.0
  %249 = vmatpush1.msra.mxu0 %v58
  %250 = vmatprep.subr.mxu0 0.0
  %251 = vmatpush1.msra.mxu0 %v59
  %252 = vmatprep.subr.mxu0 0.0
  %253 = vmatpush1.msra.mxu0 %v60
  %254 = vmatprep.subr.mxu0 0.0
  %255 = vmatpush1.msra.mxu0 %v61
  %256 = vmatprep.subr.mxu0 0.0
  %257 = vmatpush1.msra.mxu0 %v62
  %258 = vmatprep.subr.mxu0 0.0
  %259 = vmatpush1.msra.mxu0 %v63
  %260 = vmatprep.mubr.f32.mxu0 %v23
  %261 = vmatmul.mubr.f32.gmra.mrb[0].mxu0 %v22
  %v262 = vpop.f32.mrb[0].mxu0
  %v263 = vadd.f32 %v173, %v262
  %v264 = vpop.f32.mrb[0].mxu0
  %265 = vmatprep.mubr.f32.mxu0 %v25
  %266 = vmatmul.mubr.f32.gmra.mrb[0].mxu0 %v24
  %v267 = vpop.f32.mrb[0].mxu0
  %v268 = vadd.f32 %v178, %v267
  %v269 = vpop.f32.mrb[0].mxu0
  %270 = vmatprep.mubr.f32.mxu0 %v27
  %271 = vmatmul.mubr.f32.gmra.mrb[0].mxu0 %v26
  %v272 = vpop.f32.mrb[0].mxu0
  %v273 = vadd.f32 %v183, %v272
  %v274 = vpop.f32.mrb[0].mxu0
  %275 = vmatprep.mubr.f32.mxu0 %v29
  %276 = vmatmul.mubr.f32.gmra.mrb[0].mxu0 %v28
  %v277 = vpop.f32.mrb[0].mxu0
  %v278 = vadd.f32 %v188, %v277
  %v279 = vpop.f32.mrb[0].mxu0
  %280 = vmatprep.mubr.f32.mxu0 %v31
  %281 = vmatmul.mubr.f32.gmra.mrb[0].mxu0 %v30
  %v282 = vpop.f32.mrb[0].mxu0
  %v283 = vadd.f32 %v193, %v282
  %v284 = vpop.f32.mrb[0].mxu0
  %285 = vdwg.mxu0
  %v286 = vld [vmem:[%s2] sm:$0xff]
  %v287 = vld [vmem:[%s2 + $0x8] sm:$0xff]
  %v288 = vld [vmem:[%s2 + $0x10] sm:$0xff]
  %v289 = vld [vmem:[%s2 + $0x18] sm:$0xff]
  %v290 = vld [vmem:[%s2 + $0x20] sm:$0xff]
  %v291 = vld [vmem:[%s2 + $0x28] sm:$0xff]
  %v292 = vld [vmem:[%s2 + $0x30] sm:$0xff]
  %v293 = vld [vmem:[%s2 + $0x38] sm:$0xff]
  %v294 = vld [vmem:[%s2 + $0x40] sm:$0xff]
  %v295 = vld [vmem:[%s2 + $0x48] sm:$0xff]
  %v296 = vld [vmem:[%s3 + $0x200] sm:$0xff]
  %v297 = vld [vmem:[%s3 + $0x208] sm:$0xff]
  %v298 = vld [vmem:[%s3 + $0x210] sm:$0xff]
  %v299 = vld [vmem:[%s3 + $0x218] sm:$0xff]
  %v300 = vld [vmem:[%s3 + $0x220] sm:$0xff]
  %v301 = vld [vmem:[%s3 + $0x228] sm:$0xff]
  %v302 = vld [vmem:[%s3 + $0x230] sm:$0xff]
  %v303 = vld [vmem:[%s3 + $0x238] sm:$0xff]
  %v304 = vld [vmem:[%s3 + $0x240] sm:$0xff]
  %v305 = vld [vmem:[%s3 + $0x248] sm:$0xff]
  %v306 = vld [vmem:[%s3 + $0x250] sm:$0xff]
  %v307 = vld [vmem:[%s3 + $0x258] sm:$0xff]
  %v308 = vld [vmem:[%s3 + $0x260] sm:$0xff]
  %v309 = vld [vmem:[%s3 + $0x268] sm:$0xff]
  %v310 = vld [vmem:[%s3 + $0x270] sm:$0xff]
  %v311 = vld [vmem:[%s3 + $0x278] sm:$0xff]
  %v312 = vld [vmem:[%s3 + $0x280] sm:$0xff]
  %v313 = vld [vmem:[%s3 + $0x288] sm:$0xff]
  %v314 = vld [vmem:[%s3 + $0x290] sm:$0xff]
  %v315 = vld [vmem:[%s3 + $0x298] sm:$0xff]
  %v316 = vld [vmem:[%s3 + $0x2a0] sm:$0xff]
  %v317 = vld [vmem:[%s3 + $0x2a8] sm:$0xff]
  %v318 = vld [vmem:[%s3 + $0x2b0] sm:$0xff]
  %v319 = vld [vmem:[%s3 + $0x2b8] sm:$0xff]
  %v320 = vld [vmem:[%s3 + $0x2c0] sm:$0xff]
  %v321 = vld [vmem:[%s3 + $0x2c8] sm:$0xff]
  %v322 = vld [vmem:[%s3 + $0x2d0] sm:$0xff]
  %v323 = vld [vmem:[%s3 + $0x2d8] sm:$0xff]
  %v324 = vld [vmem:[%s3 + $0x2e0] sm:$0xff]
  %v325 = vld [vmem:[%s3 + $0x2e8] sm:$0xff]
  %v326 = vld [vmem:[%s3 + $0x2f0] sm:$0xff]
  %v327 = vld [vmem:[%s3 + $0x2f8] sm:$0xff]
  %328 = vmatprep.subr.mxu0 0.0
  %329 = vmatpush1.msra.mxu0 %v296
  %330 = vmatprep.subr.mxu0 0.0
  %331 = vmatpush1.msra.mxu0 %v297
  %332 = vmatprep.subr.mxu0 0.0
  %333 = vmatpush1.msra.mxu0 %v298
  %334 = vmatprep.subr.mxu0 0.0
  %335 = vmatpush1.msra.mxu0 %v299
  %336 = vmatprep.subr.mxu0 0.0
  %337 = vmatpush1.msra.mxu0 %v300
  %338 = vmatprep.subr.mxu0 0.0
  %339 = vmatpush1.msra.mxu0 %v301
  %340 = vmatprep.subr.mxu0 0.0
  %341 = vmatpush1.msra.mxu0 %v302
  %342 = vmatprep.subr.mxu0 0.0
  %343 = vmatpush1.msra.mxu0 %v303
  %344 = vmatprep.subr.mxu0 0.0
  %345 = vmatpush1.msra.mxu0 %v304
  %346 = vmatprep.subr.mxu0 0.0
  %347 = vmatpush1.msra.mxu0 %v305
  %348 = vmatprep.subr.mxu0 0.0
  %349 = vmatpush1.msra.mxu0 %v306
  %350 = vmatprep.subr.mxu0 0.0
  %351 = vmatpush1.msra.mxu0 %v307
  %352 = vmatprep.subr.mxu0 0.0
  %353 = vmatpush1.msra.mxu0 %v308
  %354 = vmatprep.subr.mxu0 0.0
  %355 = vmatpush1.msra.mxu0 %v309
  %356 = vmatprep.subr.mxu0 0.0
  %357 = vmatpush1.msra.mxu0 %v310
  %358 = vmatprep.subr.mxu0 0.0
  %359 = vmatpush1.msra.mxu0 %v311
  %360 = vmatprep.subr.mxu0 0.0
  %361 = vmatpush1.msra.mxu0 %v312
  %362 = vmatprep.subr.mxu0 0.0
  %363 = vmatpush1.msra.mxu0 %v313
  %364 = vmatprep.subr.mxu0 0.0
  %365 = vmatpush1.msra.mxu0 %v314
  %366 = vmatprep.subr.mxu0 0.0
  %367 = vmatpush1.msra.mxu0 %v315
  %368 = vmatprep.subr.mxu0 0.0
  %369 = vmatpush1.msra.mxu0 %v316
  %370 = vmatprep.subr.mxu0 0.0
  %371 = vmatpush1.msra.mxu0 %v317
  %372 = vmatprep.subr.mxu0 0.0
  %373 = vmatpush1.msra.mxu0 %v318
  %374 = vmatprep.subr.mxu0 0.0
  %375 = vmatpush1.msra.mxu0 %v319
  %376 = vmatprep.subr.mxu0 0.0
  %377 = vmatpush1.msra.mxu0 %v320
  %378 = vmatprep.subr.mxu0 0.0
  %379 = vmatpush1.msra.mxu0 %v321
  %380 = vmatprep.subr.mxu0 0.0
  %381 = vmatpush1.msra.mxu0 %v322
  %382 = vmatprep.subr.mxu0 0.0
  %383 = vmatpush1.msra.mxu0 %v323
  %384 = vmatprep.subr.mxu0 0.0
  %385 = vmatpush1.msra.mxu0 %v324
  %386 = vmatprep.subr.mxu0 0.0
  %387 = vmatpush1.msra.mxu0 %v325
  %388 = vmatprep.subr.mxu0 0.0
  %389 = vmatpush1.msra.mxu0 %v326
  %390 = vmatprep.subr.mxu0 0.0
  %391 = vmatpush1.msra.mxu0 %v327
  %392 = vmatprep.mubr.f32.mxu0 %v287
  %393 = vmatmul.mubr.f32.gmra.mrb[0].mxu0 %v286
  %v394 = vpop.f32.mrb[0].mxu0
  %v395 = vadd.f32 0.0, %v394
  %v396 = vpop.f32.mrb[0].mxu0
  %397 = vmatprep.mubr.f32.mxu0 %v289
  %398 = vmatmul.mubr.f32.gmra.mrb[0].mxu0 %v288
  %v399 = vpop.f32.mrb[0].mxu0
  %v400 = vadd.f32 0.0, %v399
  %v401 = vpop.f32.mrb[0].mxu0
  %402 = vmatprep.mubr.f32.mxu0 %v291
  %403 = vmatmul.mubr.f32.gmra.mrb[0].mxu0 %v290
  %v404 = vpop.f32.mrb[0].mxu0
  %v405 = vadd.f32 0.0, %v404
  %v406 = vpop.f32.mrb[0].mxu0
  %407 = vmatprep.mubr.f32.mxu0 %v293
  %408 = vmatmul.mubr.f32.gmra.mrb[0].mxu0 %v292
  %v409 = vpop.f32.mrb[0].mxu0
  %v410 = vadd.f32 0.0, %v409
  %v411 = vpop.f32.mrb[0].mxu0
  %412 = vmatprep.mubr.f32.mxu0 %v295
  %413 = vmatmul.mubr.f32.gmra.mrb[0].mxu0 %v294
  %v414 = vpop.f32.mrb[0].mxu0
  %v415 = vadd.f32 0.0, %v414
  %v416 = vpop.f32.mrb[0].mxu0
  %417 = vdwg.mxu0
  %v418 = vadd.f32 %v263, %v395
  %v419 = vadd.f32 %v268, %v400
  %v420 = vadd.f32 %v273, %v405
  %v421 = vadd.f32 %v278, %v410
  %v422 = vadd.f32 %v283, %v415
  %v423 = vld [vmem:[#allocation2] sm:$0x1]
  %v425 = vlaneseq
  %v426 = vshrl.u32 %v425, 7
  %v427 = vsub.s32 0, %v426
  %v428 = vrot.slane %v423, %v427
  %429 = vset.pattern.permute.xlu0 0
  %430 = vperm.xlu0 %429, %v428
  %v431 = vpop.permute.xlu0 %430
  %v433 = vadd.f32 %v418, %v431
  %v434 = vadd.f32 %v419, %v431
  %v435 = vadd.f32 %v420, %v431
  %v436 = vadd.f32 %v421, %v431
  %v437 = vadd.f32 %v422, %v431
  %v438 = vsub.f32 0.0, %v433
  %v439 = vsub.f32 0.0, %v434
  %v440 = vsub.f32 0.0, %v435
  %v441 = vsub.f32 0.0, %v436
  %v442 = vsub.f32 0.0, %v437
  %v443 = vmul.f32 %v438, 1.442695
  %v444 = vpow.pop %v443
  %v445 = vmul.f32 %v439, 1.442695
  %v446 = vpow.pop %v445
  %v447 = vmul.f32 %v440, 1.442695
  %v448 = vpow.pop %v447
  %v449 = vmul.f32 %v441, 1.442695
  %v450 = vpow.pop %v449
  %v451 = vmul.f32 %v442, 1.442695
  %v452 = vpow.pop %v451
  %v453 = vadd.f32 %v444, 1.0
  %v454 = vadd.f32 %v446, 1.0
  %v455 = vadd.f32 %v448, 1.0
  %v456 = vadd.f32 %v450, 1.0
  %v457 = vadd.f32 %v452, 1.0
  %v458 = vrcp.pop %v453
  %v459 = vmul.f32 1.0, %v458
  %v460 = vrcp.pop %v454
  %v461 = vmul.f32 1.0, %v460
  %v462 = vrcp.pop %v455
  %v463 = vmul.f32 1.0, %v462
  %v464 = vrcp.pop %v456
  %v465 = vmul.f32 1.0, %v464
  %v466 = vrcp.pop %v457
  %v467 = vmul.f32 1.0, %v466
  %v468 = vmul.f32 %v459, 1.442695
  %v469 = vpow.pop %v468
  %v470 = vmul.f32 %v461, 1.442695
  %v471 = vpow.pop %v470
  %v472 = vmul.f32 %v463, 1.442695
  %v473 = vpow.pop %v472
  %v474 = vmul.f32 %v465, 1.442695
  %v475 = vpow.pop %v474
  %v476 = vmul.f32 %v467, 1.442695
  %v477 = vpow.pop %v476
  %vm478 = vcmask 23552
  %v479 = vsel %vm478, %v469, 0.0
  %480 = vadd.xlane.f32.xlu0 %v479
  %v481 = vpop.xlane.xlu0 %480
  %v482 = vsel %vm478, %v471, 0.0
  %483 = vadd.xlane.f32.xlu0 %v482
  %v484 = vpop.xlane.xlu0 %483
  %v485 = vsel %vm478, %v473, 0.0
  %486 = vadd.xlane.f32.xlu0 %v485
  %v487 = vpop.xlane.xlu0 %486
  %v488 = vsel %vm478, %v475, 0.0
  %489 = vadd.xlane.f32.xlu0 %v488
  %v490 = vpop.xlane.xlu0 %489
  %v491 = vsel %vm478, %v477, 0.0
  %492 = vadd.xlane.f32.xlu0 %v491
  %v493 = vpop.xlane.xlu0 %492
  %v494 = vrcp.pop %v481
  %v495 = vmul.f32 %v469, %v494
  %v496 = vrcp.pop %v484
  %v497 = vmul.f32 %v471, %v496
  %v498 = vrcp.pop %v487
  %v499 = vmul.f32 %v473, %v498
  %v500 = vrcp.pop %v490
  %v501 = vmul.f32 %v475, %v500
  %v502 = vrcp.pop %v493
  %v503 = vmul.f32 %v477, %v502
  %504 = vst.msk [vmem:[%s5] sm:$0xff] %vm478, %v495
  %505 = vst.msk [vmem:[%s5 + $0x8] sm:$0xff] %vm478, %v497
  %506 = vst.msk [vmem:[%s5 + $0x10] sm:$0xff] %vm478, %v499
  %507 = vst.msk [vmem:[%s5 + $0x18] sm:$0xff] %vm478, %v501
  %508 = vst.msk [vmem:[%s5 + $0x20] sm:$0xff] %vm478, %v503
  // Predicated region
  $region22: #{gate_forward.1} parent=0 // pred_check
    _
  $region23: #{gate_forward.1} parent=0 // pred_check_branch
    %510 = sbr.rel (0) target = $region25
  $region24: #{gate_forward.1} parent=0 // pred_region
    _
  $region25: #{gate_forward.1} parent=0 // pred_fallthru
    _
  // Predicated region
  $region26: #{gate_forward.1} parent=0 // pred_check
    _
  $region27: #{gate_forward.1} parent=0 // pred_check_branch
    %512 = sbr.rel (0) target = $region29
  $region28: #{gate_forward.1} parent=0 // pred_region
    _
  $region29: #{gate_forward.1} parent=0 // pred_fallthru
    _

</llo_original>
